<compile_context>
chip_gen: v5e
topology: v5e:2x2
jax: 0.10.0
libtpu: 0.0.40
codegen_flags: <defaults>
</compile_context>

<pallas_src>
import math
import functools

import jax
import jax.numpy as jnp
from jax import lax
from jax.experimental import pallas as pl
from jax.experimental.pallas import tpu as pltpu


def _spatial_attention_kernel(t_ref, x_ref, o_ref, sum_ref, max_ref,
                              *, ksize, pad, inv_c):
    # t_ref  : VMEM (ksize, 2W, W) f32 stacked banded-Toeplitz column weights
    #          (rows [0:W) -> avg channel taps, rows [W:2W) -> max channel taps)
    # x_ref  : VMEM (C_blk, H, W)  one channel-block of x[b]
    # o_ref  : VMEM (1, H, W)      attention map for image b
    # sum_ref/max_ref : VMEM (H, W) f32 running channel sum / max
    c = pl.program_id(1)
    nc = pl.num_programs(1)
    H, W = sum_ref.shape

    # Only the block is promoted to f32 (accumulation stays f32 for accuracy).
    xb = x_ref[...].astype(jnp.float32)            # (C_blk, H, W)

    @pl.when(c == 0)
    def _init():
        sum_ref[...] = jnp.zeros_like(sum_ref)
        max_ref[...] = jnp.full_like(max_ref, -jnp.inf)

    sum_ref[...] = sum_ref[...] + jnp.sum(xb, axis=0)
    max_ref[...] = jnp.maximum(max_ref[...], jnp.max(xb, axis=0))

    @pl.when(c == nc - 1)
    def _finalize():
        avg = sum_ref[...] * inv_c                       # channel mean (H, W)
        # Single combined operand: [avg | max] along the lane axis -> (H, 2W).
        comb = jnp.concatenate([avg, max_ref[...]], axis=1)

        rows = lax.broadcasted_iota(jnp.int32, (H, 1), 0)
        acc = jnp.zeros((H, W), jnp.float32)

        for di in range(ksize):                          # kernel row offsets
            dy = di - pad
            shift = (-dy) % H
            c_r = pltpu.roll(comb, shift=shift, axis=0) if shift else comb
            # Zero-padding mask along rows only (one (H,1) mask per dy, applied
            # once per image).  Column padding is handled by the zero band of
            # the Toeplitz matrices.
            rmask = ((rows >= -dy) & (rows < H - dy)).astype(jnp.float32)
            # One MXU matmul folds both conv-input channels and all kw taps.
            # Note: MXU default precision for f32 operands may use bf16
            # passes; the test tolerance below is sized accordingly.
            acc = acc + jnp.dot(c_r * rmask, t_ref[di],
                                preferred_element_type=jnp.float32)

        o_ref[...] = jax.nn.sigmoid(acc)[None, :, :].astype(o_ref.dtype)


def _pick_c_block(C, H, W, itemsize, budget_bytes=4 << 20):
    """Largest divisor of C whose (C_blk, H, W) block fits the byte budget."""
    best = 1
    for d in range(1, C + 1):
        if C % d == 0 and d * H * W * itemsize <= budget_bytes:
            best = d
    return best


def spatial_attention(x, conv_weight, *, kernel_size=7):
    """x: (B, C, H, W); conv_weight: (1, 2, k, k). Returns (B, 1, H, W)."""
    assert kernel_size in (3, 7), "kernel size must be 3 or 7"
    pad = 3 if kernel_size == 7 else 1
    B, C, H, W = x.shape
    assert conv_weight.shape == (1, 2, kernel_size, kernel_size)

    # Fold the kw (column) taps into banded Toeplitz matrices, one (W, W)
    # matrix per (channel, row-offset):  T[c, di][j_src, j_dst] =
    #   w[c, di, j_src - j_dst + pad]  if in-band else 0.
    w2 = conv_weight[0].astype(jnp.float32)                     # (2, k, k)
    j_src = jnp.arange(W)[:, None]
    j_dst = jnp.arange(W)[None, :]
    kw_idx = j_src - j_dst + pad                                # (W, W)
    valid = (kw_idx >= 0) & (kw_idx < kernel_size)
    kw_clip = jnp.clip(kw_idx, 0, kernel_size - 1)
    toep = jnp.where(valid[None, None], w2[:, :, kw_clip], 0.0)  # (2, k, W, W)
    # Stack the two conv-input channels along the contraction axis so the
    # in-kernel conv is one matmul per row offset: (k, 2W, W).
    toep_stacked = jnp.concatenate([toep[0], toep[1]], axis=1)

    itemsize = x.dtype.itemsize
    c_blk = _pick_c_block(C, H, W, itemsize)
    nc = C // c_blk

    kernel = functools.partial(_spatial_attention_kernel,
                               ksize=kernel_size, pad=pad, inv_c=1.0 / C)

    cost = pl.CostEstimate(
        flops=int(B * (2 * C * H * W + 4 * kernel_size * H * W * W)),
        transcendentals=int(B * H * W),
        bytes_accessed=int(B * C * H * W * itemsize
                           + B * H * W * itemsize
                           + toep_stacked.size * 4),
    )

    return pl.pallas_call(
        kernel,
        out_shape=jax.ShapeDtypeStruct((B, 1, H, W), x.dtype),
        grid=(B, nc),
        in_specs=[
            # Toeplitz weights: constant block index -> stays VMEM-resident.
            pl.BlockSpec((kernel_size, 2 * W, W), lambda b, c: (0, 0, 0)),
            # One channel-block of one image per grid step.
            pl.BlockSpec((None, c_blk, H, W), lambda b, c: (b, c, 0, 0)),
        ],
        # Output block constant across the C axis: resident accumulator,
        # written only on the final C step.
        out_specs=pl.BlockSpec((None, 1, H, W), lambda b, c: (b, 0, 0, 0)),
        scratch_shapes=[
            pltpu.VMEM((H, W), jnp.float32),   # running channel sum
            pltpu.VMEM((H, W), jnp.float32),   # running channel max
        ],
        compiler_params=pltpu.CompilerParams(
            dimension_semantics=("parallel", "arbitrary"),
            vmem_limit_bytes=32 * 1024 * 1024,
        ),
        cost_estimate=cost,
    )(toep_stacked, x)


if __name__ == "__main__":
    key = jax.random.PRNGKey(0)
    kx, kw = jax.random.split(key)

    B, C, H, W = 2, 4, 16, 16
    K = 7
    x = jax.random.normal(kx, (B, C, H, W), dtype=jnp.float32)

    # Deterministic Conv2d(2, 1, 7, bias=False) init (kaiming-uniform bound).
    fan_in = 2 * K * K
    bound = 1.0 / math.sqrt(fan_in)
    w = jax.random.uniform(kw, (1, 2, K, K), jnp.float32, -bound, bound)

    out = jax.block_until_ready(spatial_attention(x, w, kernel_size=K))

    # Pure-JAX reference for correctness (high-precision conv).
    feat = jnp.concatenate(
        [jnp.mean(x, axis=1, keepdims=True), jnp.max(x, axis=1, keepdims=True)],
        axis=1)
    ref = jax.nn.sigmoid(lax.conv_general_dilated(
        feat, w, window_strides=(1, 1), padding=((3, 3), (3, 3)),
        dimension_numbers=("NCHW", "OIHW", "NCHW"),
        precision=lax.Precision.HIGHEST))

    assert out.shape == (B, 1, H, W), out.shape
    err = float(jnp.max(jnp.abs(out - ref)))
    # Tolerance allows for MXU f32 matmul default precision (bf16 passes);
    # structural/indexing errors would be orders of magnitude larger.
    assert err < 5e-3, err
    print("KERNEL_OK")
</pallas_src>

<mosaic_0001>
module attributes {stable_mosaic.version = 11 : i64} {
  func.func @_spatial_attention_kernel(%arg0: i32, %arg1: i32, %arg2: memref<7x32x16xf32, #tpu.memory_space<vmem>>, %arg3: memref<1x4x16x16xf32, #tpu.memory_space<vmem>>, %arg4: memref<1x1x16x16xf32, #tpu.memory_space<vmem>>, %arg5: memref<16x16xf32, #tpu.memory_space<vmem>>, %arg6: memref<16x16xf32, #tpu.memory_space<vmem>>) attributes {dimension_semantics = [#tpu.dimension_semantics<parallel>, #tpu.dimension_semantics<arbitrary>], iteration_bounds = array<i64: 2, 1>, scalar_prefetch = 0 : i64, scratch_operands = 2 : i64, tpu.core_type = #tpu.core_type<tc>, window_params = [{pipeline_mode = #tpu.pipeline_mode<synchronous>, transform_indices = @transform_0, window_bounds = array<i64: 7, 32, 16>}, {transform_indices = @transform_1, window_bounds = array<i64: 1, 4, 16, 16>}, {transform_indices = @transform_2, window_bounds = array<i64: 1, 1, 16, 16>}]} {
    %c0 = arith.constant 0 : index
    %c0_0 = arith.constant 0 : index
    %c0_1 = arith.constant 0 : index
    %c0_2 = arith.constant 0 : index
    %0 = vector.load %arg3[%c0, %c0_0, %c0_1, %c0_2] : memref<1x4x16x16xf32, #tpu.memory_space<vmem>>, vector<1x4x16x16xf32>
    %1 = vector.shape_cast %0 : vector<1x4x16x16xf32> to vector<4x16x16xf32>
    %c0_i32 = arith.constant 0 : i32
    %2 = arith.cmpi eq, %arg1, %c0_i32 : i32
    %3 = arith.extui %2 : i1 to i32
    %c0_i32_3 = arith.constant 0 : i32
    %4 = arith.cmpi ne, %3, %c0_i32_3 : i32
    scf.if %4 {
      %cst_15 = arith.constant 0.000000e+00 : f32
      %16 = vector.broadcast %cst_15 : f32 to vector<16x16xf32>
      %c0_16 = arith.constant 0 : index
      %c0_17 = arith.constant 0 : index
      %17 = vector.load %arg5[%c0_16, %c0_17] : memref<16x16xf32, #tpu.memory_space<vmem>>, vector<16x16xf32>
      tpu.vector_store %arg5[%c0_16, %c0_17], %16 {strides = array<i32>} : memref<16x16xf32, #tpu.memory_space<vmem>>, vector<16x16xf32>,
      %cst_18 = arith.constant 0xFF800000 : f32
      %18 = vector.broadcast %cst_18 : f32 to vector<16x16xf32>
      %c0_19 = arith.constant 0 : index
      %c0_20 = arith.constant 0 : index
      %19 = vector.load %arg6[%c0_19, %c0_20] : memref<16x16xf32, #tpu.memory_space<vmem>>, vector<16x16xf32>
      tpu.vector_store %arg6[%c0_19, %c0_20], %18 {strides = array<i32>} : memref<16x16xf32, #tpu.memory_space<vmem>>, vector<16x16xf32>,
    } else {
    }
    %c0_4 = arith.constant 0 : index
    %c0_5 = arith.constant 0 : index
    %5 = vector.load %arg5[%c0_4, %c0_5] : memref<16x16xf32, #tpu.memory_space<vmem>>, vector<16x16xf32>
    %cst = arith.constant dense<0.000000e+00> : vector<16x16xf32>
    %6 = vector.multi_reduction <add>, %1, %cst [0] : vector<4x16x16xf32> to vector<16x16xf32>
    %7 = arith.addf %5, %6 : vector<16x16xf32>
    %c0_6 = arith.constant 0 : index
    %c0_7 = arith.constant 0 : index
    %8 = vector.load %arg5[%c0_6, %c0_7] : memref<16x16xf32, #tpu.memory_space<vmem>>, vector<16x16xf32>
    tpu.vector_store %arg5[%c0_6, %c0_7], %7 {strides = array<i32>} : memref<16x16xf32, #tpu.memory_space<vmem>>, vector<16x16xf32>,
    %c0_8 = arith.constant 0 : index
    %c0_9 = arith.constant 0 : index
    %9 = vector.load %arg6[%c0_8, %c0_9] : memref<16x16xf32, #tpu.memory_space<vmem>>, vector<16x16xf32>
    %cst_10 = arith.constant dense<0xFF800000> : vector<16x16xf32>
    %10 = vector.multi_reduction <maximumf>, %1, %cst_10 [0] : vector<4x16x16xf32> to vector<16x16xf32>
    %11 = arith.maximumf %9, %10 : vector<16x16xf32>
    %c0_11 = arith.constant 0 : index
    %c0_12 = arith.constant 0 : index
    %12 = vector.load %arg6[%c0_11, %c0_12] : memref<16x16xf32, #tpu.memory_space<vmem>>, vector<16x16xf32>
    tpu.vector_store %arg6[%c0_11, %c0_12], %11 {strides = array<i32>} : memref<16x16xf32, #tpu.memory_space<vmem>>, vector<16x16xf32>,
    %c0_i32_13 = arith.constant 0 : i32
    %13 = arith.cmpi eq, %arg1, %c0_i32_13 : i32
    %14 = arith.extui %13 : i1 to i32
    %c0_i32_14 = arith.constant 0 : i32
    %15 = arith.cmpi ne, %14, %c0_i32_14 : i32
    scf.if %15 {
      %c0_15 = arith.constant 0 : index
      %c0_16 = arith.constant 0 : index
      %16 = vector.load %arg5[%c0_15, %c0_16] : memref<16x16xf32, #tpu.memory_space<vmem>>, vector<16x16xf32>
      %cst_17 = arith.constant 2.500000e-01 : f32
      %17 = vector.broadcast %cst_17 : f32 to vector<16x16xf32>
      %18 = arith.mulf %16, %17 : vector<16x16xf32>
      %c0_18 = arith.constant 0 : index
      %c0_19 = arith.constant 0 : index
      %19 = vector.load %arg6[%c0_18, %c0_19] : memref<16x16xf32, #tpu.memory_space<vmem>>, vector<16x16xf32>
      %20 = tpu.concatenate %18, %19 in 1 : vector<16x16xf32>, vector<16x16xf32> -> vector<16x32xf32>
      %21 = tpu.iota {dimensions = array<i32: 0>} : vector<16x1xi32>
      %cst_20 = arith.constant 0.000000e+00 : f32
      %22 = vector.broadcast %cst_20 : f32 to vector<16x16xf32>
      %c3_i32 = arith.constant 3 : i32
      %23 = tpu.dynamic_rotate %20 by %c3_i32 dim 0 : vector<16x32xf32>, i32 -> vector<16x32xf32>
      %c3_i32_21 = arith.constant 3 : i32
      %24 = vector.broadcast %c3_i32_21 : i32 to vector<16x1xi32>
      %25 = arith.cmpi sge, %21, %24 : vector<16x1xi32>
      %c19_i32 = arith.constant 19 : i32
      %26 = vector.broadcast %c19_i32 : i32 to vector<16x1xi32>
      %27 = arith.cmpi slt, %21, %26 : vector<16x1xi32>
      %28 = arith.andi %25, %27 : vector<16x1xi1>
      %29 = arith.extui %28 : vector<16x1xi1> to vector<16x1xi32>
      %30 = arith.sitofp %29 : vector<16x1xi32> to vector<16x1xf32>
      %31 = vector.broadcast %30 : vector<16x1xf32> to vector<16x32xf32>
      %32 = arith.mulf %23, %31 : vector<16x32xf32>
      %c0_22 = arith.constant 0 : index
      %c0_23 = arith.constant 0 : index
      %c0_24 = arith.constant 0 : index
      %33 = vector.load %arg2[%c0_22, %c0_23, %c0_24] : memref<7x32x16xf32, #tpu.memory_space<vmem>>, vector<1x32x16xf32>
      %34 = vector.shape_cast %33 : vector<1x32x16xf32> to vector<32x16xf32>
      %cst_25 = arith.constant dense<0.000000e+00> : vector<16x16xf32>
      %35 = tpu.matmul %32, %34, %cst_25 {dimension_numbers = #tpu.dot_dimension_numbers<[1], [0], [0], [1], [0, 0, 1, 1], [], []>} : vector<16x32xf32>, vector<32x16xf32>, vector<16x16xf32> -> vector<16x16xf32>
      %36 = arith.addf %22, %35 : vector<16x16xf32>
      %c2_i32 = arith.constant 2 : i32
      %37 = tpu.dynamic_rotate %20 by %c2_i32 dim 0 : vector<16x32xf32>, i32 -> vector<16x32xf32>
      %c2_i32_26 = arith.constant 2 : i32
      %38 = vector.broadcast %c2_i32_26 : i32 to vector<16x1xi32>
      %39 = arith.cmpi sge, %21, %38 : vector<16x1xi32>
      %c18_i32 = arith.constant 18 : i32
      %40 = vector.broadcast %c18_i32 : i32 to vector<16x1xi32>
      %41 = arith.cmpi slt, %21, %40 : vector<16x1xi32>
      %42 = arith.andi %39, %41 : vector<16x1xi1>
      %43 = arith.extui %42 : vector<16x1xi1> to vector<16x1xi32>
      %44 = arith.sitofp %43 : vector<16x1xi32> to vector<16x1xf32>
      %45 = vector.broadcast %44 : vector<16x1xf32> to vector<16x32xf32>
      %46 = arith.mulf %37, %45 : vector<16x32xf32>
      %c1 = arith.constant 1 : index
      %c0_27 = arith.constant 0 : index
      %c0_28 = arith.constant 0 : index
      %47 = vector.load %arg2[%c1, %c0_27, %c0_28] : memref<7x32x16xf32, #tpu.memory_space<vmem>>, vector<1x32x16xf32>
      %48 = vector.shape_cast %47 : vector<1x32x16xf32> to vector<32x16xf32>
      %cst_29 = arith.constant dense<0.000000e+00> : vector<16x16xf32>
      %49 = tpu.matmul %46, %48, %cst_29 {dimension_numbers = #tpu.dot_dimension_numbers<[1], [0], [0], [1], [0, 0, 1, 1], [], []>} : vector<16x32xf32>, vector<32x16xf32>, vector<16x16xf32> -> vector<16x16xf32>
      %50 = arith.addf %36, %49 : vector<16x16xf32>
      %c1_i32 = arith.constant 1 : i32
      %51 = tpu.dynamic_rotate %20 by %c1_i32 dim 0 : vector<16x32xf32>, i32 -> vector<16x32xf32>
      %c1_i32_30 = arith.constant 1 : i32
      %52 = vector.broadcast %c1_i32_30 : i32 to vector<16x1xi32>
      %53 = arith.cmpi sge, %21, %52 : vector<16x1xi32>
      %c17_i32 = arith.constant 17 : i32
      %54 = vector.broadcast %c17_i32 : i32 to vector<16x1xi32>
      %55 = arith.cmpi slt, %21, %54 : vector<16x1xi32>
      %56 = arith.andi %53, %55 : vector<16x1xi1>
      %57 = arith.extui %56 : vector<16x1xi1> to vector<16x1xi32>
      %58 = arith.sitofp %57 : vector<16x1xi32> to vector<16x1xf32>
      %59 = vector.broadcast %58 : vector<16x1xf32> to vector<16x32xf32>
      %60 = arith.mulf %51, %59 : vector<16x32xf32>
      %c2 = arith.constant 2 : index
      %c0_31 = arith.constant 0 : index
      %c0_32 = arith.constant 0 : index
      %61 = vector.load %arg2[%c2, %c0_31, %c0_32] : memref<7x32x16xf32, #tpu.memory_space<vmem>>, vector<1x32x16xf32>
      %62 = vector.shape_cast %61 : vector<1x32x16xf32> to vector<32x16xf32>
      %cst_33 = arith.constant dense<0.000000e+00> : vector<16x16xf32>
      %63 = tpu.matmul %60, %62, %cst_33 {dimension_numbers = #tpu.dot_dimension_numbers<[1], [0], [0], [1], [0, 0, 1, 1], [], []>} : vector<16x32xf32>, vector<32x16xf32>, vector<16x16xf32> -> vector<16x16xf32>
      %64 = arith.addf %50, %63 : vector<16x16xf32>
      %c0_i32_34 = arith.constant 0 : i32
      %65 = vector.broadcast %c0_i32_34 : i32 to vector<16x1xi32>
      %66 = arith.cmpi sge, %21, %65 : vector<16x1xi32>
      %c16_i32 = arith.constant 16 : i32
      %67 = vector.broadcast %c16_i32 : i32 to vector<16x1xi32>
      %68 = arith.cmpi slt, %21, %67 : vector<16x1xi32>
      %69 = arith.andi %66, %68 : vector<16x1xi1>
      %70 = arith.extui %69 : vector<16x1xi1> to vector<16x1xi32>
      %71 = arith.sitofp %70 : vector<16x1xi32> to vector<16x1xf32>
      %72 = vector.broadcast %71 : vector<16x1xf32> to vector<16x32xf32>
      %73 = arith.mulf %20, %72 : vector<16x32xf32>
      %c3 = arith.constant 3 : index
      %c0_35 = arith.constant 0 : index
      %c0_36 = arith.constant 0 : index
      %74 = vector.load %arg2[%c3, %c0_35, %c0_36] : memref<7x32x16xf32, #tpu.memory_space<vmem>>, vector<1x32x16xf32>
      %75 = vector.shape_cast %74 : vector<1x32x16xf32> to vector<32x16xf32>
      %cst_37 = arith.constant dense<0.000000e+00> : vector<16x16xf32>
      %76 = tpu.matmul %73, %75, %cst_37 {dimension_numbers = #tpu.dot_dimension_numbers<[1], [0], [0], [1], [0, 0, 1, 1], [], []>} : vector<16x32xf32>, vector<32x16xf32>, vector<16x16xf32> -> vector<16x16xf32>
      %77 = arith.addf %64, %76 : vector<16x16xf32>
      %c15_i32 = arith.constant 15 : i32
      %78 = tpu.dynamic_rotate %20 by %c15_i32 dim 0 : vector<16x32xf32>, i32 -> vector<16x32xf32>
      %c-1_i32 = arith.constant -1 : i32
      %79 = vector.broadcast %c-1_i32 : i32 to vector<16x1xi32>
      %80 = arith.cmpi sge, %21, %79 : vector<16x1xi32>
      %c15_i32_38 = arith.constant 15 : i32
      %81 = vector.broadcast %c15_i32_38 : i32 to vector<16x1xi32>
      %82 = arith.cmpi slt, %21, %81 : vector<16x1xi32>
      %83 = arith.andi %80, %82 : vector<16x1xi1>
      %84 = arith.extui %83 : vector<16x1xi1> to vector<16x1xi32>
      %85 = arith.sitofp %84 : vector<16x1xi32> to vector<16x1xf32>
      %86 = vector.broadcast %85 : vector<16x1xf32> to vector<16x32xf32>
      %87 = arith.mulf %78, %86 : vector<16x32xf32>
      %c4 = arith.constant 4 : index
      %c0_39 = arith.constant 0 : index
      %c0_40 = arith.constant 0 : index
      %88 = vector.load %arg2[%c4, %c0_39, %c0_40] : memref<7x32x16xf32, #tpu.memory_space<vmem>>, vector<1x32x16xf32>
      %89 = vector.shape_cast %88 : vector<1x32x16xf32> to vector<32x16xf32>
      %cst_41 = arith.constant dense<0.000000e+00> : vector<16x16xf32>
      %90 = tpu.matmul %87, %89, %cst_41 {dimension_numbers = #tpu.dot_dimension_numbers<[1], [0], [0], [1], [0, 0, 1, 1], [], []>} : vector<16x32xf32>, vector<32x16xf32>, vector<16x16xf32> -> vector<16x16xf32>
      %91 = arith.addf %77, %90 : vector<16x16xf32>
      %c14_i32 = arith.constant 14 : i32
      %92 = tpu.dynamic_rotate %20 by %c14_i32 dim 0 : vector<16x32xf32>, i32 -> vector<16x32xf32>
      %c-2_i32 = arith.constant -2 : i32
      %93 = vector.broadcast %c-2_i32 : i32 to vector<16x1xi32>
      %94 = arith.cmpi sge, %21, %93 : vector<16x1xi32>
      %c14_i32_42 = arith.constant 14 : i32
      %95 = vector.broadcast %c14_i32_42 : i32 to vector<16x1xi32>
      %96 = arith.cmpi slt, %21, %95 : vector<16x1xi32>
      %97 = arith.andi %94, %96 : vector<16x1xi1>
      %98 = arith.extui %97 : vector<16x1xi1> to vector<16x1xi32>
      %99 = arith.sitofp %98 : vector<16x1xi32> to vector<16x1xf32>
      %100 = vector.broadcast %99 : vector<16x1xf32> to vector<16x32xf32>
      %101 = arith.mulf %92, %100 : vector<16x32xf32>
      %c5 = arith.constant 5 : index
      %c0_43 = arith.constant 0 : index
      %c0_44 = arith.constant 0 : index
      %102 = vector.load %arg2[%c5, %c0_43, %c0_44] : memref<7x32x16xf32, #tpu.memory_space<vmem>>, vector<1x32x16xf32>
      %103 = vector.shape_cast %102 : vector<1x32x16xf32> to vector<32x16xf32>
      %cst_45 = arith.constant dense<0.000000e+00> : vector<16x16xf32>
      %104 = tpu.matmul %101, %103, %cst_45 {dimension_numbers = #tpu.dot_dimension_numbers<[1], [0], [0], [1], [0, 0, 1, 1], [], []>} : vector<16x32xf32>, vector<32x16xf32>, vector<16x16xf32> -> vector<16x16xf32>
      %105 = arith.addf %91, %104 : vector<16x16xf32>
      %c13_i32 = arith.constant 13 : i32
      %106 = tpu.dynamic_rotate %20 by %c13_i32 dim 0 : vector<16x32xf32>, i32 -> vector<16x32xf32>
      %c-3_i32 = arith.constant -3 : i32
      %107 = vector.broadcast %c-3_i32 : i32 to vector<16x1xi32>
      %108 = arith.cmpi sge, %21, %107 : vector<16x1xi32>
      %c13_i32_46 = arith.constant 13 : i32
      %109 = vector.broadcast %c13_i32_46 : i32 to vector<16x1xi32>
      %110 = arith.cmpi slt, %21, %109 : vector<16x1xi32>
      %111 = arith.andi %108, %110 : vector<16x1xi1>
      %112 = arith.extui %111 : vector<16x1xi1> to vector<16x1xi32>
      %113 = arith.sitofp %112 : vector<16x1xi32> to vector<16x1xf32>
      %114 = vector.broadcast %113 : vector<16x1xf32> to vector<16x32xf32>
      %115 = arith.mulf %106, %114 : vector<16x32xf32>
      %c6 = arith.constant 6 : index
      %c0_47 = arith.constant 0 : index
      %c0_48 = arith.constant 0 : index
      %116 = vector.load %arg2[%c6, %c0_47, %c0_48] : memref<7x32x16xf32, #tpu.memory_space<vmem>>, vector<1x32x16xf32>
      %117 = vector.shape_cast %116 : vector<1x32x16xf32> to vector<32x16xf32>
      %cst_49 = arith.constant dense<0.000000e+00> : vector<16x16xf32>
      %118 = tpu.matmul %115, %117, %cst_49 {dimension_numbers = #tpu.dot_dimension_numbers<[1], [0], [0], [1], [0, 0, 1, 1], [], []>} : vector<16x32xf32>, vector<32x16xf32>, vector<16x16xf32> -> vector<16x16xf32>
      %119 = arith.addf %105, %118 : vector<16x16xf32>
      %120 = arith.negf %119 : vector<16x16xf32>
      %121 = math.exp %120 : vector<16x16xf32>
      %cst_50 = arith.constant 1.000000e+00 : f32
      %122 = vector.broadcast %cst_50 : f32 to vector<16x16xf32>
      %123 = arith.addf %122, %121 : vector<16x16xf32>
      %124 = arith.divf %122, %123 : vector<16x16xf32>
      %125 = vector.shape_cast %124 : vector<16x16xf32> to vector<1x16x16xf32>
      %c0_51 = arith.constant 0 : index
      %c0_52 = arith.constant 0 : index
      %c0_53 = arith.constant 0 : index
      %c0_54 = arith.constant 0 : index
      %126 = vector.load %arg4[%c0_51, %c0_52, %c0_53, %c0_54] : memref<1x1x16x16xf32, #tpu.memory_space<vmem>>, vector<1x1x16x16xf32>
      %127 = vector.shape_cast %126 : vector<1x1x16x16xf32> to vector<1x16x16xf32>
      %128 = vector.shape_cast %125 : vector<1x16x16xf32> to vector<1x1x16x16xf32>
      tpu.vector_store %arg4[%c0_51, %c0_52, %c0_53, %c0_54], %128 {strides = array<i32>} : memref<1x1x16x16xf32, #tpu.memory_space<vmem>>, vector<1x1x16x16xf32>,
    } else {
    }
    return
  }
  func.func @transform_0(%arg0: i32, %arg1: i32) -> (i32, i32, i32) {
    %c0_i32 = arith.constant 0 : i32
    %c0_i32_0 = arith.constant 0 : i32
    %c0_i32_1 = arith.constant 0 : i32
    %c0_i32_2 = arith.constant 0 : i32
    return %c0_i32, %c0_i32_0, %c0_i32_1 : i32, i32, i32
  }
  func.func @transform_1(%arg0: i32, %arg1: i32) -> (i32, i32, i32, i32) {
    %c0_i32 = arith.constant 0 : i32
    %c0_i32_0 = arith.constant 0 : i32
    %c0_i32_1 = arith.constant 0 : i32
    return %arg0, %arg1, %c0_i32, %c0_i32_0 : i32, i32, i32, i32
  }
  func.func @transform_2(%arg0: i32, %arg1: i32) -> (i32, i32, i32, i32) {
    %c0_i32 = arith.constant 0 : i32
    %c0_i32_0 = arith.constant 0 : i32
    %c0_i32_1 = arith.constant 0 : i32
    %c0_i32_2 = arith.constant 0 : i32
    return %arg0, %c0_i32, %c0_i32_0, %c0_i32_1 : i32, i32, i32, i32
  }
}

</mosaic_0001>

<llo_original>
// kernel: tpu_custom_call.1
$region0: #{tpu_custom_call.1}
  #allocation0 [shape = 'u32[]', space=smem, size = 0x4, offset = 0x4, fixed_abs, tag = 'smem constant byte address 0x4 - core index']
  #allocation1 [shape = 'u32[72,128]{1,0:T(1,128)}', space=vmem, size = 0x9000, scoped, tag = 'internal scratch']
  #allocation2 [shape = 'f32[16,16]{1,0:T(8,128)}', space=vmem, size = 0x2000, scoped, tag = 'scratch operand']
  #allocation3 [shape = 'f32[16,16]{1,0:T(8,128)}', space=vmem, size = 0x2000, scoped, tag = 'scratch operand']
  %s0 = inlined_call_operand.vmem [shape: f32[7,32,16], index: 0, kind: input, shape index: {}]
  %s1 = inlined_call_operand.vmem [shape: f32[2,4,16,16], index: 1, kind: input, shape index: {}]
  %s2 = inlined_call_operand.hbm [shape: f32[2,1,16,16], index: 2, kind: output, shape index: {}]
  %s3 = sld [smem:[#allocation0]]
  $region49: #{tpu_custom_call.1} parent=0
    _
  %s5 = ssub.s32 1, %s3
  %s6 = scalar_select 0, %s5, %s3
  $region1: #{tpu_custom_call.1} parent=0
    #allocation4 [shape = 'u8[16384]{0}', space=vmem, size = 0x4000, scoped, tag = 'output window, operand 0']
    #allocation5 [shape = 's32[2]{0}', space=sflag, size = 0x8, scoped, tag = 'scoped memory for tpu_custom_call.1']
    %7 = vsyncpa [#allocation5], 0
    %s8 = scalar_lea.sflag [#allocation5], 1
    %9 = vsyncpa %s8, 0
    loop: start=0, step=1, limit=4
    $region2: #{tpu_custom_call.1} parent=1 // loop_pre_header
      _
    $region3: #{tpu_custom_call.1} parent=1 // loop_header
      %s11 = sphi 0, %s15
      %p12 = scmp.ge.s32.totalorder %s11, 4
      %s18 = sphi 0, %s30
      %s19 = sphi 0, %s26
      %s20 = sphi 0, %s18
      %s21 = sphi 0, %s19
      %s22 = sphi 0, %s20
      %s23 = sphi 0, %s21
      %s31 = sphi 0, %s31
      %s33 = sphi 0, %s31
      %s34 = sphi 0, %s33
      %s48 = sphi 0, %s34
      %s56 = sphi 0, %s58
      %s59 = sphi 0, %s56
      %s60 = sphi 0, %s59
      %s76 = sphi 0, %s60
      %s82 = sphi 0, %s84
      %s85 = sphi 0, %s82
      %s86 = sphi 0, %s85
      %s102 = sphi 0, %s86
    $region4: #{tpu_custom_call.1} parent=1 // loop_header_branch
      %14 = sbr.rel (%p12) target = $region8
    $region5: #{tpu_custom_call.1} parent=1 // loop_body
      %s16 = ssub.s32 %s11, 1
      %s17 = ssub.s32 %s11, 2
      %s24 = sadd.s32 1, %s19
      %p25 = scmp.ge.s32.totalorder %s24, 1
      %s26 = scalar_select %p25, 0, %s24
      %s27 = sadd.s32 1, %s18
      %s28 = scalar_select %p25, %s27, %s18
      %p29 = scmp.ge.s32.totalorder %s28, 2
      %s30 = scalar_select %p29, 0, %s28
      %s32 = sadd.s32 %s31, 1
      %p35 = scmp.eq.s32.totalorder %s11, 1
      %p36 = scmp.ne.s32.totalorder %s31, %s33
      %p37 = scmp.eq.s32.totalorder %s11, 0
      %p38 = por %p36, %p37
      %p39 = scmp.ne.s32.totalorder %s31, %s33
      %p40 = scmp.eq.s32.totalorder %s16, 1
      %p41 = por %p39, %p40
      %p42 = scmp.ne.s32.totalorder %s33, %s34
      %p43 = scmp.eq.s32.totalorder %s16, 0
      %p44 = por %p42, %p43
      %p45 = scmp.ne.s32.totalorder %s33, %s34
      %p46 = scmp.eq.s32.totalorder %s17, 1
      %p47 = por %p45, %p46
      %p49 = scmp.ne.s32.totalorder %s34, %s48
      %p50 = scmp.eq.s32.totalorder %s17, 0
      %p51 = por %p49, %p50
      %s52 = ssub.s32 %s18, %s30
      %s53 = ssub.s32 %s19, %s26
      %s54 = sor.u32 %s52, %s53
      %p55 = scmp.eq.s32.totalorder %s54, 0
      %s57 = sadd.s32 %s56, 1
      %s58 = scalar_select %p55, %s56, %s57
      %p61 = pneg %p55
      %p62 = scmp.eq.s32.totalorder %s11, 1
      %p63 = por %p61, %p62
      %p64 = scmp.ne.s32.totalorder %s56, %s59
      %p65 = scmp.eq.s32.totalorder %s11, 0
      %p66 = por %p64, %p65
      %p67 = scmp.ne.s32.totalorder %s56, %s59
      %p68 = scmp.eq.s32.totalorder %s16, 1
      %p69 = por %p67, %p68
      %p70 = scmp.ne.s32.totalorder %s59, %s60
      %p71 = scmp.eq.s32.totalorder %s16, 0
      %p72 = por %p70, %p71
      %p73 = scmp.ne.s32.totalorder %s59, %s60
      %p74 = scmp.eq.s32.totalorder %s17, 1
      %p75 = por %p73, %p74
      %p77 = scmp.ne.s32.totalorder %s60, %s76
      %p78 = scmp.eq.s32.totalorder %s17, 0
      %p79 = por %p77, %p78
      %s80 = ssub.s32 %s18, %s30
      %p81 = scmp.eq.s32.totalorder %s80, 0
      %s83 = sadd.s32 %s82, 1
      %s84 = scalar_select %p81, %s82, %s83
      %p87 = pneg %p81
      %p88 = scmp.eq.s32.totalorder %s11, 1
      %p89 = por %p87, %p88
      %p90 = scmp.ne.s32.totalorder %s82, %s85
      %p91 = scmp.eq.s32.totalorder %s11, 0
      %p92 = por %p90, %p91
      %p93 = scmp.ne.s32.totalorder %s82, %s85
      %p94 = scmp.eq.s32.totalorder %s16, 1
      %p95 = por %p93, %p94
      %p96 = scmp.ne.s32.totalorder %s85, %s86
      %p97 = scmp.eq.s32.totalorder %s16, 0
      %p98 = por %p96, %p97
      %p99 = scmp.ne.s32.totalorder %s85, %s86
      %p100 = scmp.eq.s32.totalorder %s17, 1
      %p101 = por %p99, %p100
      %p103 = scmp.ne.s32.totalorder %s86, %s102
      %p104 = scmp.eq.s32.totalorder %s17, 0
      %p105 = por %p103, %p104
      %p106 = scmp.le.s32.totalorder 1, %s11
      %p107 = scmp.lt.s32.totalorder %s11, 3
      %p108 = pnand %p106, %p107
      %p109 = pneg %p108
      // Predicated region
      $region9: #{tpu_custom_call.1} parent=5 // pred_check
        _
      $region10: #{tpu_custom_call.1} parent=5 // pred_check_branch
        %111 = sbr.rel (%p108) target = $region12
      $region11: #{tpu_custom_call.1} parent=5 // pred_region
        %s112 = ssub.s32 %s11, 1
        // Predicated region
        $region13: #{tpu_custom_call.1} parent=11 // pred_check
          %p113 = pneg %p44
        $region14: #{tpu_custom_call.1} parent=11 // pred_check_branch
          %115 = sbr.rel (%p113) target = $region16
        $region15: #{tpu_custom_call.1} parent=11 // pred_region
          _
        $region16: #{tpu_custom_call.1} parent=11 // pred_fallthru
          _
      $region12: #{tpu_custom_call.1} parent=5 // pred_fallthru
        _
      %p116 = scmp.lt.s32.totalorder %s11, 2
      // Predicated region
      $region17: #{tpu_custom_call.1} parent=5 // pred_check
        %p117 = pneg %p116
      $region18: #{tpu_custom_call.1} parent=5 // pred_check_branch
        %119 = sbr.rel (%p117) target = $region20
      $region19: #{tpu_custom_call.1} parent=5 // pred_region
        // Predicated region
        $region21: #{tpu_custom_call.1} parent=19 // pred_check
          %p120 = pneg %p66
        $region22: #{tpu_custom_call.1} parent=19 // pred_check_branch
          %122 = sbr.rel (%p120) target = $region24
        $region23: #{tpu_custom_call.1} parent=19 // pred_region
          %s123 = smul.u32 4, %s19
          %p124 = scmp.lt.s32.totalorder %s18, 1
          %s125 = scalar_select %p124, %s18, 1
          %p126 = scmp.lt.s32.totalorder %s123, 3
          %s127 = scalar_select %p126, %s123, 3
          %s128 = smul.addr %s127, 2
          %s129 = smul.addr %s125, 8
          %s130 = sadd.s32 %s128, %s129
          %s131 = smul.addr %s130, 8
          %s132 = scalar_lea.vmem %s1, %s131
          %s133 = smul.u32 4, %s19
        $region24: #{tpu_custom_call.1} parent=19 // pred_fallthru
          _
      $region20: #{tpu_custom_call.1} parent=5 // pred_fallthru
        _
      %p134 = scmp.le.s32.totalorder 1, %s11
      %p135 = scmp.lt.s32.totalorder %s11, 3
      %p136 = pnand %p134, %p135
      %p137 = pneg %p136
      // Predicated region
      $region25: #{tpu_custom_call.1} parent=5 // pred_check
        _
      $region26: #{tpu_custom_call.1} parent=5 // pred_check_branch
        %139 = sbr.rel (%p136) target = $region28
      $region27: #{tpu_custom_call.1} parent=5 // pred_region
        %s140 = ssub.s32 %s11, 1
        %p141 = pneg %p44
        %p142 = pneg %p41
        %s143 = smul.u32 4, %s21
        %p144 = scmp.lt.s32.totalorder %s20, 1
        %s145 = scalar_select %p144, %s20, 1
        %p146 = scmp.lt.s32.totalorder %s143, 3
        %s147 = scalar_select %p146, %s143, 3
        %s148 = smul.addr %s147, 2
        %s149 = smul.addr %s145, 8
        %s150 = sadd.s32 %s148, %s149
        %s151 = smul.addr %s150, 8
        %s152 = scalar_lea.vmem %s1, %s151
        %p153 = pneg %p72
        %p154 = pneg %p69
        %p155 = pneg %p98
        %p156 = pneg %p95
        %s157 = sand.u32 %s85, 1
        %s158 = scalar_lea.sflag [#allocation5], %s157
        %s159 = sand.u32 %s85, 1
        %s160 = smul.addr %s159, 16
        %s161 = scalar_lea.vmem [#allocation4], %s160
        %s162 = smul.u32 4, %s21
        %p163 = scmp.lt.s32.totalorder %s20, 1
        %s164 = scalar_select %p163, %s20, 1
        %p165 = scmp.lt.s32.totalorder %s162, 3
        %s166 = scalar_select %p165, %s162, 3
        %s167 = smul.addr %s166, 2
        %s168 = smul.addr %s164, 8
        %s169 = sadd.s32 %s167, %s168
        %s170 = smul.addr %s169, 8
        %s171 = scalar_lea.vmem %s1, %s170
        %s172 = smul.u32 4, %s21
        %v173 = vld [vmem:[%s171] sm:$0xff]
        %v174 = vld [vmem:[%s171 + $0x8] sm:$0xff]
        %v175 = vld [vmem:[%s171 + $0x10] sm:$0xff]
        %v176 = vld [vmem:[%s171 + $0x18] sm:$0xff]
        %v177 = vld [vmem:[%s171 + $0x20] sm:$0xff]
        %v178 = vld [vmem:[%s171 + $0x28] sm:$0xff]
        %v179 = vld [vmem:[%s171 + $0x30] sm:$0xff]
        %v180 = vld [vmem:[%s171 + $0x38] sm:$0xff]
        %p181 = scmp.eq.s32.totalorder %s21, 0
        // Predicated region
        $region29: #{tpu_custom_call.1} parent=27 // pred_check
          %p182 = pneg %p181
        $region30: #{tpu_custom_call.1} parent=27 // pred_check_branch
          %184 = sbr.rel (%p182) target = $region32
        $region31: #{tpu_custom_call.1} parent=27 // pred_region
          %vm185 = vcmask 130048
          %186 = vst.msk [vmem:[#allocation2] sm:$0xff] %vm185, 0.0
          %187 = vst.msk [vmem:[#allocation2 + $0x8] sm:$0xff] %vm185, 0.0
          %188 = vst.msk [vmem:[#allocation3] sm:$0xff] %vm185, -inf
          %189 = vst.msk [vmem:[#allocation3 + $0x8] sm:$0xff] %vm185, -inf
        $region32: #{tpu_custom_call.1} parent=27 // pred_fallthru
          _
        %v190 = vld [vmem:[#allocation2] sm:$0xff]
        %v191 = vld [vmem:[#allocation2 + $0x8] sm:$0xff]
        %vm192 = vcmask 130048
        %v193 = vsel %vm192, %v173, 0.0
        %v194 = vsel %vm192, %v175, 0.0
        %v195 = vadd.f32 %v193, %v194
        %v196 = vsel %vm192, %v177, 0.0
        %v197 = vadd.f32 %v195, %v196
        %v198 = vsel %vm192, %v179, 0.0
        %v199 = vadd.f32 %v197, %v198
        %v200 = vsel %vm192, %v174, 0.0
        %v201 = vsel %vm192, %v176, 0.0
        %v202 = vadd.f32 %v200, %v201
        %v203 = vsel %vm192, %v178, 0.0
        %v204 = vadd.f32 %v202, %v203
        %v205 = vsel %vm192, %v180, 0.0
        %v206 = vadd.f32 %v204, %v205
        %v207 = vadd.f32 %v190, %v199
        %v208 = vadd.f32 %v191, %v206
        %209 = vst.msk [vmem:[#allocation2] sm:$0xff] %vm192, %v207
        %210 = vst.msk [vmem:[#allocation2 + $0x8] sm:$0xff] %vm192, %v208
        %v211 = vld [vmem:[#allocation3] sm:$0xff]
        %v212 = vld [vmem:[#allocation3 + $0x8] sm:$0xff]
        %v213 = vsel %vm192, %v173, -inf
        %v214 = vsel %vm192, %v175, -inf
        %v215 = vsel %vm192, %v177, -inf
        %v216 = vmax.f32 %v213, %v215
        %v217 = vsel %vm192, %v179, -inf
        %v218 = vmax.f32 %v214, %v217
        %v219 = vmax.f32 %v216, %v218
        %v220 = vsel %vm192, %v174, -inf
        %v221 = vsel %vm192, %v176, -inf
        %v222 = vsel %vm192, %v178, -inf
        %v223 = vmax.f32 %v220, %v222
        %v224 = vsel %vm192, %v180, -inf
        %v225 = vmax.f32 %v221, %v224
        %v226 = vmax.f32 %v223, %v225
        %v227 = vmax.f32 %v211, %v219
        %v228 = vmax.f32 %v212, %v226
        %229 = vst.msk [vmem:[#allocation3] sm:$0xff] %vm192, %v227
        %230 = vst.msk [vmem:[#allocation3 + $0x8] sm:$0xff] %vm192, %v228
        // Predicated region
        $region33: #{tpu_custom_call.1} parent=27 // pred_check
          %p231 = pneg %p181
        $region34: #{tpu_custom_call.1} parent=27 // pred_check_branch
          %233 = sbr.rel (%p231) target = $region36
        $region35: #{tpu_custom_call.1} parent=27 // pred_region
          %v234 = vld [vmem:[#allocation2] sm:$0xff]
          %v235 = vld [vmem:[#allocation2 + $0x8] sm:$0xff]
          %v236 = vmul.f32 %v234, 0.25
          %v237 = vmul.f32 %v235, 0.25
          %v238 = vld [vmem:[#allocation3] sm:$0xff]
          %v239 = vld [vmem:[#allocation3 + $0x8] sm:$0xff]
          %242 = vrot.lane.b32.xlu0 %v238, 16
          %v243 = vpop.permute.xlu0 %242
          %244 = vrot.lane.b32.xlu0 %v239, 16
          %v245 = vpop.permute.xlu0 %244
          %v248 = vsel %vm192, %v236, %v243
          %v249 = vsel %vm192, %v237, %v245
          %v250 = vlaneseq
          %v251 = vshrl.u32 %v250, 7
          %v252 = vadd.s32 %v251, 8
          %v253 = vrot.slane %v248, 5
          %v254 = vrot.slane %v249, 5
          %vm255 = vcmp.lt.s32.totalorder %v251, 3
          %v256 = vsel %vm255, %v253, %v254
          %v257 = vsel %vm255, %v254, %v253
          %vm258 = vcmp.ge.s32.totalorder %v251, 3
          %vm259 = vcmp.ge.s32.totalorder %v252, 3
          %vm260 = vcmp.lt.s32.totalorder %v251, 19
          %vm261 = vcmp.lt.s32.totalorder %v252, 19
          %vm262 = vmand %vm258, %vm260
          %vm263 = vmand %vm259, %vm261
          %v264 = vsel %vm262, 1, 0
          %v265 = vsel %vm263, 1, 0
          %v266 = vcvt.s32.f32 %v264
          %v267 = vcvt.s32.f32 %v265
          %v268 = vmul.f32 %v257, %v266
          %v269 = vmul.f32 %v256, %v267
          %v270 = vld [vmem:[%s0] sm:$0xff]
          %v271 = vld [vmem:[%s0 + $0x8] sm:$0xff]
          %v272 = vld [vmem:[%s0 + $0x10] sm:$0xff]
          %v273 = vld [vmem:[%s0 + $0x18] sm:$0xff]
          %v274 = vrot.slane %v248, 6
          %v275 = vrot.slane %v249, 6
          %vm276 = vcmp.lt.s32.totalorder %v251, 2
          %v277 = vsel %vm276, %v274, %v275
          %v278 = vsel %vm276, %v275, %v274
          %vm279 = vcmp.ge.s32.totalorder %v251, 2
          %vm280 = vcmp.ge.s32.totalorder %v252, 2
          %vm281 = vcmp.lt.s32.totalorder %v251, 18
          %vm282 = vcmp.lt.s32.totalorder %v252, 18
          %vm283 = vmand %vm279, %vm281
          %vm284 = vmand %vm280, %vm282
          %v285 = vsel %vm283, 1, 0
          %v286 = vsel %vm284, 1, 0
          %v287 = vcvt.s32.f32 %v285
          %v288 = vcvt.s32.f32 %v286
          %v289 = vmul.f32 %v278, %v287
          %v290 = vmul.f32 %v277, %v288
          %s291 = scalar_lea.vmem %s0, 32
          %v292 = vld [vmem:[%s291] sm:$0xff]
          %v293 = vld [vmem:[%s291 + $0x8] sm:$0xff]
          %v294 = vld [vmem:[%s291 + $0x10] sm:$0xff]
          %v295 = vld [vmem:[%s291 + $0x18] sm:$0xff]
          %vm296 = vcmask 261120
          %v298 = vsel %vm296, %v289, 0
          %v301 = vsel %vm296, %v290, 0
          %303 = vmatpush.msra.mxu0 0.0
          %304 = vmatpush.msra.mxu0 0.0
          %305 = vmatpush.msra.mxu0 0.0
          %306 = vmatpush.msra.mxu0 0.0
          %307 = vmatpush.msra.mxu0 0.0
          %308 = vmatpush.msra.mxu0 0.0
          %309 = vmatpush.msra.mxu0 0.0
          %310 = vmatpush.msra.mxu0 0.0
          %311 = vmatpush.msra.mxu0 0.0
          %312 = vmatpush.msra.mxu0 0.0
          %313 = vmatpush.msra.mxu0 0.0
          %314 = vmatpush.msra.mxu0 0.0
          %315 = vmatpush.msra.mxu0 %v295
          %316 = vmatpush.msra.mxu0 %v294
          %317 = vmatpush.msra.mxu0 %v293
          %318 = vmatpush.msra.mxu0 %v292
          %319 = vmatmul.f32.gmra.mxu0 %v298
          %v320 = vpop.f32.mrf.mxu0
          %v321 = vadd.f32 0.0, %v320
          %322 = vmatmul.f32.gmra.mxu0 %v301
          %v323 = vpop.f32.mrf.mxu0
          %v324 = vadd.f32 0.0, %v323
          %325 = vdwg.mxu0
          %v327 = vsel %vm296, %v268, 0
          %v330 = vsel %vm296, %v269, 0
          %332 = vmatpush.msra.mxu0 0.0
          %333 = vmatpush.msra.mxu0 0.0
          %334 = vmatpush.msra.mxu0 0.0
          %335 = vmatpush.msra.mxu0 0.0
          %336 = vmatpush.msra.mxu0 0.0
          %337 = vmatpush.msra.mxu0 0.0
          %338 = vmatpush.msra.mxu0 0.0
          %339 = vmatpush.msra.mxu0 0.0
          %340 = vmatpush.msra.mxu0 0.0
          %341 = vmatpush.msra.mxu0 0.0
          %342 = vmatpush.msra.mxu0 0.0
          %343 = vmatpush.msra.mxu0 0.0
          %344 = vmatpush.msra.mxu0 %v273
          %345 = vmatpush.msra.mxu0 %v272
          %346 = vmatpush.msra.mxu0 %v271
          %347 = vmatpush.msra.mxu0 %v270
          %348 = vmatmul.f32.gmra.mxu0 %v327
          %v349 = vpop.f32.mrf.mxu0
          %v350 = vadd.f32 %v321, %v349
          %351 = vmatmul.f32.gmra.mxu0 %v330
          %v352 = vpop.f32.mrf.mxu0
          %v353 = vadd.f32 %v324, %v352
          %354 = vdwg.mxu0
          %v355 = vrot.slane %v248, 7
          %v356 = vrot.slane %v249, 7
          %vm357 = vcmp.lt.s32.totalorder %v251, 1
          %v358 = vsel %vm357, %v355, %v356
          %v359 = vsel %vm357, %v356, %v355
          %vm360 = vcmp.ge.s32.totalorder %v251, 1
          %vm361 = vcmp.ge.s32.totalorder %v252, 1
          %vm362 = vcmp.lt.s32.totalorder %v251, 17
          %vm363 = vcmp.lt.s32.totalorder %v252, 17
          %vm364 = vmand %vm360, %vm362
          %vm365 = vmand %vm361, %vm363
          %v366 = vsel %vm364, 1, 0
          %v367 = vsel %vm365, 1, 0
          %v368 = vcvt.s32.f32 %v366
          %v369 = vcvt.s32.f32 %v367
          %v370 = vmul.f32 %v359, %v368
          %v371 = vmul.f32 %v358, %v369
          %s372 = scalar_lea.vmem %s0, 64
          %v373 = vld [vmem:[%s372] sm:$0xff]
          %v374 = vld [vmem:[%s372 + $0x8] sm:$0xff]
          %v375 = vld [vmem:[%s372 + $0x10] sm:$0xff]
          %v376 = vld [vmem:[%s372 + $0x18] sm:$0xff]
          %v378 = vsel %vm296, %v370, 0
          %v381 = vsel %vm296, %v371, 0
          %383 = vmatpush.msra.mxu0 0.0
          %384 = vmatpush.msra.mxu0 0.0
          %385 = vmatpush.msra.mxu0 0.0
          %386 = vmatpush.msra.mxu0 0.0
          %387 = vmatpush.msra.mxu0 0.0
          %388 = vmatpush.msra.mxu0 0.0
          %389 = vmatpush.msra.mxu0 0.0
          %390 = vmatpush.msra.mxu0 0.0
          %391 = vmatpush.msra.mxu0 0.0
          %392 = vmatpush.msra.mxu0 0.0
          %393 = vmatpush.msra.mxu0 0.0
          %394 = vmatpush.msra.mxu0 0.0
          %395 = vmatpush.msra.mxu0 %v376
          %396 = vmatpush.msra.mxu0 %v375
          %397 = vmatpush.msra.mxu0 %v374
          %398 = vmatpush.msra.mxu0 %v373
          %399 = vmatmul.f32.gmra.mxu0 %v378
          %v400 = vpop.f32.mrf.mxu0
          %v401 = vadd.f32 0.0, %v400
          %402 = vmatmul.f32.gmra.mxu0 %v381
          %v403 = vpop.f32.mrf.mxu0
          %v404 = vadd.f32 0.0, %v403
          %405 = vdwg.mxu0
          %v406 = vadd.f32 %v350, %v401
          %v407 = vadd.f32 %v353, %v404
          %vm408 = vcmp.ge.s32.totalorder %v251, 0
          %vm409 = vcmp.ge.s32.totalorder %v252, 0
          %vm410 = vcmp.lt.s32.totalorder %v251, 16
          %vm411 = vcmp.lt.s32.totalorder %v252, 16
          %vm412 = vmand %vm408, %vm410
          %vm413 = vmand %vm409, %vm411
          %v414 = vsel %vm412, 1, 0
          %v415 = vsel %vm413, 1, 0
          %v416 = vcvt.s32.f32 %v414
          %v417 = vcvt.s32.f32 %v415
          %v418 = vmul.f32 %v248, %v416
          %v419 = vmul.f32 %v249, %v417
          %s420 = scalar_lea.vmem %s0, 96
          %v421 = vld [vmem:[%s420] sm:$0xff]
          %v422 = vld [vmem:[%s420 + $0x8] sm:$0xff]
          %v423 = vld [vmem:[%s420 + $0x10] sm:$0xff]
          %v424 = vld [vmem:[%s420 + $0x18] sm:$0xff]
          %v426 = vsel %vm296, %v418, 0
          %v429 = vsel %vm296, %v419, 0
          %431 = vmatpush.msra.mxu0 0.0
          %432 = vmatpush.msra.mxu0 0.0
          %433 = vmatpush.msra.mxu0 0.0
          %434 = vmatpush.msra.mxu0 0.0
          %435 = vmatpush.msra.mxu0 0.0
          %436 = vmatpush.msra.mxu0 0.0
          %437 = vmatpush.msra.mxu0 0.0
          %438 = vmatpush.msra.mxu0 0.0
          %439 = vmatpush.msra.mxu0 0.0
          %440 = vmatpush.msra.mxu0 0.0
          %441 = vmatpush.msra.mxu0 0.0
          %442 = vmatpush.msra.mxu0 0.0
          %443 = vmatpush.msra.mxu0 %v424
          %444 = vmatpush.msra.mxu0 %v423
          %445 = vmatpush.msra.mxu0 %v422
          %446 = vmatpush.msra.mxu0 %v421
          %447 = vmatmul.f32.gmra.mxu0 %v426
          %v448 = vpop.f32.mrf.mxu0
          %v449 = vadd.f32 0.0, %v448
          %450 = vmatmul.f32.gmra.mxu0 %v429
          %v451 = vpop.f32.mrf.mxu0
          %v452 = vadd.f32 0.0, %v451
          %453 = vdwg.mxu0
          %v454 = vadd.f32 %v406, %v449
          %v455 = vadd.f32 %v407, %v452
          %v456 = vrot.slane %v248, 1
          %v457 = vrot.slane %v249, 1
          %vm458 = vcmp.lt.s32.totalorder %v251, 7
          %v459 = vsel %vm458, %v456, %v457
          %v460 = vsel %vm458, %v457, %v456
          %vm461 = vcmp.ge.s32.totalorder %v251, 4294967295
          %vm462 = vcmp.ge.s32.totalorder %v252, 4294967295
          %vm463 = vcmp.lt.s32.totalorder %v251, 15
          %vm464 = vcmp.lt.s32.totalorder %v252, 15
          %vm465 = vmand %vm461, %vm463
          %vm466 = vmand %vm462, %vm464
          %v467 = vsel %vm465, 1, 0
          %v468 = vsel %vm466, 1, 0
          %v469 = vcvt.s32.f32 %v467
          %v470 = vcvt.s32.f32 %v468
          %v471 = vmul.f32 %v459, %v469
          %v472 = vmul.f32 %v460, %v470
          %s473 = scalar_lea.vmem %s0, 128
          %v474 = vld [vmem:[%s473] sm:$0xff]
          %v475 = vld [vmem:[%s473 + $0x8] sm:$0xff]
          %v476 = vld [vmem:[%s473 + $0x10] sm:$0xff]
          %v477 = vld [vmem:[%s473 + $0x18] sm:$0xff]
          %v479 = vsel %vm296, %v471, 0
          %v482 = vsel %vm296, %v472, 0
          %484 = vmatpush.msra.mxu0 0.0
          %485 = vmatpush.msra.mxu0 0.0
          %486 = vmatpush.msra.mxu0 0.0
          %487 = vmatpush.msra.mxu0 0.0
          %488 = vmatpush.msra.mxu0 0.0
          %489 = vmatpush.msra.mxu0 0.0
          %490 = vmatpush.msra.mxu0 0.0
          %491 = vmatpush.msra.mxu0 0.0
          %492 = vmatpush.msra.mxu0 0.0
          %493 = vmatpush.msra.mxu0 0.0
          %494 = vmatpush.msra.mxu0 0.0
          %495 = vmatpush.msra.mxu0 0.0
          %496 = vmatpush.msra.mxu0 %v477
          %497 = vmatpush.msra.mxu0 %v476
          %498 = vmatpush.msra.mxu0 %v475
          %499 = vmatpush.msra.mxu0 %v474
          %500 = vmatmul.f32.gmra.mxu0 %v479
          %v501 = vpop.f32.mrf.mxu0
          %v502 = vadd.f32 0.0, %v501
          %503 = vmatmul.f32.gmra.mxu0 %v482
          %v504 = vpop.f32.mrf.mxu0
          %v505 = vadd.f32 0.0, %v504
          %506 = vdwg.mxu0
          %v507 = vadd.f32 %v454, %v502
          %v508 = vadd.f32 %v455, %v505
          %v509 = vrot.slane %v248, 2
          %v510 = vrot.slane %v249, 2
          %vm511 = vcmp.lt.s32.totalorder %v251, 6
          %v512 = vsel %vm511, %v509, %v510
          %v513 = vsel %vm511, %v510, %v509
          %vm514 = vcmp.ge.s32.totalorder %v251, 4294967294
          %vm515 = vcmp.ge.s32.totalorder %v252, 4294967294
          %vm516 = vcmp.lt.s32.totalorder %v251, 14
          %vm517 = vcmp.lt.s32.totalorder %v252, 14
          %vm518 = vmand %vm514, %vm516
          %vm519 = vmand %vm515, %vm517
          %v520 = vsel %vm518, 1, 0
          %v521 = vsel %vm519, 1, 0
          %v522 = vcvt.s32.f32 %v520
          %v523 = vcvt.s32.f32 %v521
          %v524 = vmul.f32 %v512, %v522
          %v525 = vmul.f32 %v513, %v523
          %s526 = scalar_lea.vmem %s0, 160
          %v527 = vld [vmem:[%s526] sm:$0xff]
          %v528 = vld [vmem:[%s526 + $0x8] sm:$0xff]
          %v529 = vld [vmem:[%s526 + $0x10] sm:$0xff]
          %v530 = vld [vmem:[%s526 + $0x18] sm:$0xff]
          %v532 = vsel %vm296, %v524, 0
          %v535 = vsel %vm296, %v525, 0
          %537 = vmatpush.msra.mxu0 0.0
          %538 = vmatpush.msra.mxu0 0.0
          %539 = vmatpush.msra.mxu0 0.0
          %540 = vmatpush.msra.mxu0 0.0
          %541 = vmatpush.msra.mxu0 0.0
          %542 = vmatpush.msra.mxu0 0.0
          %543 = vmatpush.msra.mxu0 0.0
          %544 = vmatpush.msra.mxu0 0.0
          %545 = vmatpush.msra.mxu0 0.0
          %546 = vmatpush.msra.mxu0 0.0
          %547 = vmatpush.msra.mxu0 0.0
          %548 = vmatpush.msra.mxu0 0.0
          %549 = vmatpush.msra.mxu0 %v530
          %550 = vmatpush.msra.mxu0 %v529
          %551 = vmatpush.msra.mxu0 %v528
          %552 = vmatpush.msra.mxu0 %v527
          %553 = vmatmul.f32.gmra.mxu0 %v532
          %v554 = vpop.f32.mrf.mxu0
          %v555 = vadd.f32 0.0, %v554
          %556 = vmatmul.f32.gmra.mxu0 %v535
          %v557 = vpop.f32.mrf.mxu0
          %v558 = vadd.f32 0.0, %v557
          %559 = vdwg.mxu0
          %v560 = vadd.f32 %v507, %v555
          %v561 = vadd.f32 %v508, %v558
          %v562 = vrot.slane %v248, 3
          %v563 = vrot.slane %v249, 3
          %vm564 = vcmp.lt.s32.totalorder %v251, 5
          %v565 = vsel %vm564, %v562, %v563
          %v566 = vsel %vm564, %v563, %v562
          %vm567 = vcmp.ge.s32.totalorder %v251, 4294967293
          %vm568 = vcmp.ge.s32.totalorder %v252, 4294967293
          %vm569 = vcmp.lt.s32.totalorder %v251, 13
          %vm570 = vcmp.lt.s32.totalorder %v252, 13
          %vm571 = vmand %vm567, %vm569
          %vm572 = vmand %vm568, %vm570
          %v573 = vsel %vm571, 1, 0
          %v574 = vsel %vm572, 1, 0
          %v575 = vcvt.s32.f32 %v573
          %v576 = vcvt.s32.f32 %v574
          %v577 = vmul.f32 %v565, %v575
          %v578 = vmul.f32 %v566, %v576
          %s579 = scalar_lea.vmem %s0, 192
          %v580 = vld [vmem:[%s579] sm:$0xff]
          %v581 = vld [vmem:[%s579 + $0x8] sm:$0xff]
          %v582 = vld [vmem:[%s579 + $0x10] sm:$0xff]
          %v583 = vld [vmem:[%s579 + $0x18] sm:$0xff]
          %v585 = vsel %vm296, %v577, 0
          %v588 = vsel %vm296, %v578, 0
          %590 = vmatpush.msra.mxu0 0.0
          %591 = vmatpush.msra.mxu0 0.0
          %592 = vmatpush.msra.mxu0 0.0
          %593 = vmatpush.msra.mxu0 0.0
          %594 = vmatpush.msra.mxu0 0.0
          %595 = vmatpush.msra.mxu0 0.0
          %596 = vmatpush.msra.mxu0 0.0
          %597 = vmatpush.msra.mxu0 0.0
          %598 = vmatpush.msra.mxu0 0.0
          %599 = vmatpush.msra.mxu0 0.0
          %600 = vmatpush.msra.mxu0 0.0
          %601 = vmatpush.msra.mxu0 0.0
          %602 = vmatpush.msra.mxu0 %v583
          %603 = vmatpush.msra.mxu0 %v582
          %604 = vmatpush.msra.mxu0 %v581
          %605 = vmatpush.msra.mxu0 %v580
          %606 = vmatmul.f32.gmra.mxu0 %v585
          %v607 = vpop.f32.mrf.mxu0
          %v608 = vadd.f32 0.0, %v607
          %609 = vmatmul.f32.gmra.mxu0 %v588
          %v610 = vpop.f32.mrf.mxu0
          %v611 = vadd.f32 0.0, %v610
          %612 = vdwg.mxu0
          %v613 = vadd.f32 %v560, %v608
          %v614 = vadd.f32 %v561, %v611
          %v615 = vxor.u32 %v613, 2147483648
          %v616 = vxor.u32 %v614, 2147483648
          %v617 = vmul.f32 %v615, 1.442695
          %v618 = vpow.pop %v617
          %v619 = vmul.f32 %v616, 1.442695
          %v620 = vpow.pop %v619
          %v621 = vadd.f32 %v618, 1.0
          %v622 = vadd.f32 %v620, 1.0
          %v623 = vrcp.pop %v621
          %v624 = vmul.f32 %v621, %v623
          %v625 = vsub.f32 1.0, %v624
          %v626 = vmul.f32 %v623, %v625
          %v627 = vadd.f32 %v623, %v626
          %vm628 = vweird.f32 %v621
          %vm629 = vweird.f32 %v623
          %vm630 = vmor %vm628, %vm629
          %v631 = vsel %vm630, %v623, %v627
          %v632 = vand.u32 2147483647, %v621
          %vm633 = vcmp.eq.f32.partialorder %v632, 8.507059e+37
          %v634 = vand.u32 %v621, 2147483648
          %v635 = vor.u32 1.1754944e-38, %v634
          %v636 = vsel %vm633, %v635, %v631
          %v637 = vmul.f32 1.0, %v636
          %v638 = vrcp.pop %v622
          %v639 = vmul.f32 %v622, %v638
          %v640 = vsub.f32 1.0, %v639
          %v641 = vmul.f32 %v638, %v640
          %v642 = vadd.f32 %v638, %v641
          %vm643 = vweird.f32 %v622
          %vm644 = vweird.f32 %v638
          %vm645 = vmor %vm643, %vm644
          %v646 = vsel %vm645, %v638, %v642
          %v647 = vand.u32 2147483647, %v622
          %vm648 = vcmp.eq.f32.partialorder %v647, 8.507059e+37
          %v649 = vand.u32 %v622, 2147483648
          %v650 = vor.u32 1.1754944e-38, %v649
          %v651 = vsel %vm648, %v650, %v646
          %v652 = vmul.f32 1.0, %v651
          %653 = vst.msk [vmem:[%s161] sm:$0xff] %vm192, %v637
          %654 = vst.msk [vmem:[%s161 + $0x8] sm:$0xff] %vm192, %v652
        $region36: #{tpu_custom_call.1} parent=27 // pred_fallthru
          _
        %s655 = sand.u32 %s85, 1
        %s656 = scalar_lea.sflag [#allocation5], %s655
        %s657 = sand.u32 %s85, 1
        %s658 = smul.addr %s657, 16
        %s659 = scalar_lea.vmem [#allocation4], %s658
        // Predicated region
        $region37: #{tpu_custom_call.1} parent=27 // pred_check
          %p660 = pneg %p95
        $region38: #{tpu_custom_call.1} parent=27 // pred_check_branch
          %662 = sbr.rel (%p660) target = $region40
        $region39: #{tpu_custom_call.1} parent=27 // pred_region
          %664 = vsyncadd %s656, 0
          %s665 = smul.addr %s20, 2
          %s666 = smul.addr %s665, 8
          %s667 = scalar_lea.hbm %s2, %s666
          %s668 = sshll.u32 %s659, 4
          %s669 = int_to_ptr.vmem [resolvable:$true] %s668
          %s670 = sshll.u32 %s667, 4
          %s671 = int_to_ptr.hbm [resolvable:$true] %s670
          %676 = dma.vmem_to_hbm [thread:$0]  %s669, 256, %s671, %s656, 128, 128, 8
        $region40: #{tpu_custom_call.1} parent=27 // pred_fallthru
          _
      $region28: #{tpu_custom_call.1} parent=5 // pred_fallthru
        _
      %p677 = scmp.le.s32.totalorder 2, %s11
      // Predicated region
      $region41: #{tpu_custom_call.1} parent=5 // pred_check
        %p678 = pneg %p677
      $region42: #{tpu_custom_call.1} parent=5 // pred_check_branch
        %680 = sbr.rel (%p678) target = $region44
      $region43: #{tpu_custom_call.1} parent=5 // pred_region
        %s681 = ssub.s32 %s11, 2
        // Predicated region
        $region45: #{tpu_custom_call.1} parent=43 // pred_check
          %p682 = pneg %p101
        $region46: #{tpu_custom_call.1} parent=43 // pred_check_branch
          %684 = sbr.rel (%p682) target = $region48
        $region47: #{tpu_custom_call.1} parent=43 // pred_region
          %s685 = sand.u32 %s86, 1
          %s686 = scalar_lea.sflag [#allocation5], %s685
          %s687 = sand.u32 %s86, 1
          %s688 = smul.addr %s687, 16
          %s689 = scalar_lea.vmem [#allocation4], %s688
          %691 = dma.done %s686, 256
        $region48: #{tpu_custom_call.1} parent=43 // pred_fallthru
          _
      $region44: #{tpu_custom_call.1} parent=5 // pred_fallthru
        _
    $region6: #{tpu_custom_call.1} parent=1 // loop_footer
      %s15 = sadd.s32 1, %s11
    $region7: #{tpu_custom_call.1} parent=1 // loop_footer_branch
      %10 = sbr.rel target = $region3
    $region8: #{tpu_custom_call.1} parent=1 // loop_exit
      _
    %692 = vsyncpa [#allocation5], 1
    %s693 = scalar_lea.sflag [#allocation5], 1
    %694 = vsyncpa %s693, 1

</llo_original>
